<compile_context>
chip_gen: v7x
topology: tpu7x:2x2x1
jax: 0.10.0
libtpu: 0.0.40
codegen_flags: <defaults>
</compile_context>

<pallas_src>
import jax
import jax.numpy as jnp
from jax.experimental import pallas as pl
from jax.experimental.pallas import tpu as pltpu


def _attention_kernel(enc_ref, dec_ref, wl_enc_ref, wl_dec_ref, wo_ref,
                      ctx_ref, w_ref):
    # enc_ref:    (B, S, H)
    # dec_ref:    (B, H)
    # wl_enc_ref: (H, 2H)   encoder half of W_l.T
    # wl_dec_ref: (H, 2H)   decoder half of W_l.T
    # wo_ref:     (1, 2H)   W_o as a feature row
    # ctx_ref:    (B, H)
    # w_ref:      (B, S)
    B, S, H = enc_ref.shape
    H2 = 2 * H

    enc = enc_ref[...]                                        # (B, S, H)

    # tanh(cat(enc, dec) @ Wl.T) == tanh(enc @ WlT_enc + dec @ WlT_dec)
    # One whole-batch 2-D MXU matmul for the encoder part.
    x = jnp.dot(enc.reshape(B * S, H), wl_enc_ref[...],
                preferred_element_type=jnp.float32)           # (B*S, 2H)
    xd = jnp.dot(dec_ref[...], wl_dec_ref[...],
                 preferred_element_type=jnp.float32)          # (B, 2H)
    x = jnp.tanh(x.reshape(B, S, H2) + xd[:, None, :])        # (B, S, 2H)

    # Attention scores with S on the lane axis: VPU multiply + lane reduction
    # (2H is tiny, so this beats a 1-column MXU matmul).
    scores = jnp.sum(x * wo_ref[...], axis=-1)                # (B, S), f32

    # Softmax over S: dense lane reductions on a (B, S) row block.
    m = jnp.max(scores, axis=-1, keepdims=True)               # (B, 1)
    p = jnp.exp(scores - m)                                   # (B, S)
    denom = jnp.sum(p, axis=-1, keepdims=True)                # (B, 1)
    w = p * pl.reciprocal(denom, approx=True)                 # EUP reciprocal

    w_ref[...] = w.astype(w_ref.dtype)                        # lane-dense (B, S) store

    # context = attention_weights @ encoder_output : batched MXU dot.
    ctx = jnp.einsum("bqs,bsh->bqh",
                     w[:, None, :].astype(enc.dtype), enc,
                     preferred_element_type=jnp.float32)      # (B, 1, H)
    ctx_ref[...] = ctx.reshape(B, H).astype(ctx_ref.dtype)    # (B, H) store


def attention_forward(encoder_output, decoder_hidden, w_l, w_o):
    """encoder_output: (B, S, H); decoder_hidden: (1, B, H);
       w_l: (2H, 2H) torch-style [out, in]; w_o: (1, 2H) torch-style [out, in]."""
    B, S, H = encoder_output.shape
    dec = decoder_hidden[0]          # squeeze(0) -> (B, H)
    wlT = w_l.T                      # (2H, 2H) = (in, out)
    wl_enc = wlT[:H, :]              # (H, 2H): encoder half of the concat
    wl_dec = wlT[H:, :]              # (H, 2H): decoder half of the concat
    # w_o stays as the (1, 2H) feature row; it is contracted with a lane reduce.

    ctx, weights = pl.pallas_call(
        _attention_kernel,
        out_shape=(
            jax.ShapeDtypeStruct((B, H), encoder_output.dtype),
            jax.ShapeDtypeStruct((B, S), encoder_output.dtype),
        ),
        # Single invocation (no grid): every operand is a whole-array VMEM block,
        # so there is no per-batch pipeline overhead and weights stay resident.
        in_specs=[
            pl.BlockSpec(memory_space=pltpu.MemorySpace.VMEM),  # encoder_output
            pl.BlockSpec(memory_space=pltpu.MemorySpace.VMEM),  # dec
            pl.BlockSpec(memory_space=pltpu.MemorySpace.VMEM),  # wl_enc
            pl.BlockSpec(memory_space=pltpu.MemorySpace.VMEM),  # wl_dec
            pl.BlockSpec(memory_space=pltpu.MemorySpace.VMEM),  # w_o
        ],
        out_specs=(
            pl.BlockSpec(memory_space=pltpu.MemorySpace.VMEM),  # context
            pl.BlockSpec(memory_space=pltpu.MemorySpace.VMEM),  # attention weights
        ),
        compiler_params=pltpu.CompilerParams(vmem_limit_bytes=64 << 20),
    )(encoder_output, dec, wl_enc, wl_dec, w_o)
    return ctx, weights


def _reference(encoder_output, decoder_hidden, w_l, w_o):
    # Pure-JAX reference mirroring the PyTorch forward.
    dec = decoder_hidden[0]                                    # (B, H)
    dec = jnp.repeat(dec[:, None, :], encoder_output.shape[1], axis=1)
    combined = jnp.concatenate([encoder_output, dec], axis=2)  # (B, S, 2H)
    x = jnp.tanh(combined @ w_l.T)                             # (B, S, 2H)
    att = (x @ w_o.T)[..., 0]                                  # (B, S)
    aw = jax.nn.softmax(att, axis=1)
    ctx = jnp.einsum("bs,bsh->bh", aw, encoder_output)
    return ctx, aw


if __name__ == "__main__":
    B, S, H = 2, 8, 16  # hidden_size = 16 -> linear dims of 2H = 32

    key = jax.random.PRNGKey(0)
    k1, k2, k3, k4 = jax.random.split(key, 4)

    encoder_output = jax.random.normal(k1, (B, S, H), dtype=jnp.float32)
    decoder_hidden = jax.random.normal(k2, (1, B, H), dtype=jnp.float32)
    # Deterministic parameter init (torch Linear weight shape is [out, in]).
    w_l = jax.random.normal(k3, (2 * H, 2 * H), dtype=jnp.float32) * 0.1
    w_o = jax.random.normal(k4, (1, 2 * H), dtype=jnp.float32) * 0.1

    ctx, weights = attention_forward(encoder_output, decoder_hidden, w_l, w_o)
    jax.block_until_ready((ctx, weights))

    ref_ctx, ref_w = _reference(encoder_output, decoder_hidden, w_l, w_o)
    # Tolerance accounts for the EUP approximate reciprocal (~2^-12 relative
    # error) used for the softmax normalisation.
    assert jnp.allclose(ctx, ref_ctx, atol=2e-3, rtol=2e-3)
    assert jnp.allclose(weights, ref_w, atol=2e-3, rtol=2e-3)

    print("KERNEL_OK")
</pallas_src>

<mosaic_0001>
module attributes {stable_mosaic.version = 11 : i64} {
  func.func @_attention_kernel(%arg0: memref<2x8x16xf32, #tpu.memory_space<vmem>>, %arg1: memref<2x16xf32, #tpu.memory_space<vmem>>, %arg2: memref<16x32xf32, #tpu.memory_space<vmem>>, %arg3: memref<16x32xf32, #tpu.memory_space<vmem>>, %arg4: memref<1x32xf32, #tpu.memory_space<vmem>>, %arg5: memref<2x16xf32, #tpu.memory_space<vmem>>, %arg6: memref<2x8xf32, #tpu.memory_space<vmem>>) attributes {dimension_semantics = [], scalar_prefetch = 0 : i64, scratch_operands = 0 : i64, tpu.core_type = #tpu.core_type<tc>} {
    %c0 = arith.constant 0 : index
    %c0_0 = arith.constant 0 : index
    %c0_1 = arith.constant 0 : index
    %0 = vector.load %arg0[%c0, %c0_0, %c0_1] : memref<2x8x16xf32, #tpu.memory_space<vmem>>, vector<2x8x16xf32>
    %1 = vector.shape_cast %0 : vector<2x8x16xf32> to vector<16x16xf32>
    %c0_2 = arith.constant 0 : index
    %c0_3 = arith.constant 0 : index
    %2 = vector.load %arg2[%c0_2, %c0_3] : memref<16x32xf32, #tpu.memory_space<vmem>>, vector<16x32xf32>
    %cst = arith.constant dense<0.000000e+00> : vector<16x32xf32>
    %3 = tpu.matmul %1, %2, %cst {dimension_numbers = #tpu.dot_dimension_numbers<[1], [0], [0], [1], [0, 0, 1, 1], [], []>} : vector<16x16xf32>, vector<16x32xf32>, vector<16x32xf32> -> vector<16x32xf32>
    %c0_4 = arith.constant 0 : index
    %c0_5 = arith.constant 0 : index
    %4 = vector.load %arg1[%c0_4, %c0_5] : memref<2x16xf32, #tpu.memory_space<vmem>>, vector<2x16xf32>
    %c0_6 = arith.constant 0 : index
    %c0_7 = arith.constant 0 : index
    %5 = vector.load %arg3[%c0_6, %c0_7] : memref<16x32xf32, #tpu.memory_space<vmem>>, vector<16x32xf32>
    %cst_8 = arith.constant dense<0.000000e+00> : vector<2x32xf32>
    %6 = tpu.matmul %4, %5, %cst_8 {dimension_numbers = #tpu.dot_dimension_numbers<[1], [0], [0], [1], [0, 0, 1, 1], [], []>} : vector<2x16xf32>, vector<16x32xf32>, vector<2x32xf32> -> vector<2x32xf32>
    %7 = vector.shape_cast %3 : vector<16x32xf32> to vector<2x8x32xf32>
    %8 = vector.shape_cast %6 : vector<2x32xf32> to vector<2x1x32xf32>
    %9 = vector.broadcast %8 : vector<2x1x32xf32> to vector<2x8x32xf32>
    %10 = arith.addf %7, %9 : vector<2x8x32xf32>
    %11 = math.tanh %10 : vector<2x8x32xf32>
    %c0_9 = arith.constant 0 : index
    %c0_10 = arith.constant 0 : index
    %12 = vector.load %arg4[%c0_9, %c0_10] : memref<1x32xf32, #tpu.memory_space<vmem>>, vector<1x32xf32>
    %13 = vector.shape_cast %12 : vector<1x32xf32> to vector<1x1x32xf32>
    %14 = vector.broadcast %13 : vector<1x1x32xf32> to vector<2x8x32xf32>
    %15 = arith.mulf %11, %14 : vector<2x8x32xf32>
    %cst_11 = arith.constant dense<0.000000e+00> : vector<2x8xf32>
    %16 = vector.multi_reduction <add>, %15, %cst_11 [2] : vector<2x8x32xf32> to vector<2x8xf32>
    %cst_12 = arith.constant dense<0xFF800000> : vector<2xf32>
    %17 = vector.multi_reduction <maximumf>, %16, %cst_12 [1] : vector<2x8xf32> to vector<2xf32>
    %18 = vector.shape_cast %17 : vector<2xf32> to vector<2x1xf32>
    %19 = vector.broadcast %18 : vector<2x1xf32> to vector<2x8xf32>
    %20 = arith.subf %16, %19 : vector<2x8xf32>
    %21 = math.exp %20 : vector<2x8xf32>
    %cst_13 = arith.constant dense<0.000000e+00> : vector<2xf32>
    %22 = vector.multi_reduction <add>, %21, %cst_13 [1] : vector<2x8xf32> to vector<2xf32>
    %23 = vector.shape_cast %22 : vector<2xf32> to vector<2x1xf32>
    %24 = tpu.reciprocal %23 {approx = true} : vector<2x1xf32> -> vector<2x1xf32>
    %25 = vector.broadcast %24 : vector<2x1xf32> to vector<2x8xf32>
    %26 = arith.mulf %21, %25 : vector<2x8xf32>
    %c0_14 = arith.constant 0 : index
    %c0_15 = arith.constant 0 : index
    %27 = vector.load %arg6[%c0_14, %c0_15] : memref<2x8xf32, #tpu.memory_space<vmem>>, vector<2x8xf32>
    tpu.vector_store %arg6[%c0_14, %c0_15], %26 {strides = array<i32>} : memref<2x8xf32, #tpu.memory_space<vmem>>, vector<2x8xf32>,
    %28 = vector.shape_cast %26 : vector<2x8xf32> to vector<2x1x8xf32>
    "tpu.trace_start"() <{level = 10 : i32, message = "bqs,bsh->bqh"}> : () -> ()
    %cst_16 = arith.constant dense<0.000000e+00> : vector<2x1x16xf32>
    %29 = tpu.matmul %28, %0, %cst_16 {dimension_numbers = #tpu.dot_dimension_numbers<[2], [1], [1], [2], [0, 0, 0, 1, 1, 2], [0], [0]>} : vector<2x1x8xf32>, vector<2x8x16xf32>, vector<2x1x16xf32> -> vector<2x1x16xf32>
    "tpu.trace_stop"() : () -> ()
    %30 = vector.shape_cast %29 : vector<2x1x16xf32> to vector<2x16xf32>
    %c0_17 = arith.constant 0 : index
    %c0_18 = arith.constant 0 : index
    %31 = vector.load %arg5[%c0_17, %c0_18] : memref<2x16xf32, #tpu.memory_space<vmem>>, vector<2x16xf32>
    tpu.vector_store %arg5[%c0_17, %c0_18], %30 {strides = array<i32>} : memref<2x16xf32, #tpu.memory_space<vmem>>, vector<2x16xf32>,
    return
  }
}

</mosaic_0001>

<llo_original>
// kernel: tpu_custom_call.1
$region0: #{tpu_custom_call.1}
  #allocation0 [shape = 'u32[]', space=smem, size = 0x4, offset = 0x4, fixed_abs, tag = 'smem constant byte address 0x4 - core index']
  #allocation1 [shape = 'u32[144,128]{1,0:T(1,128)}', space=vmem, size = 0x12000, scoped, tag = 'internal scratch']
  %s0 = inlined_call_operand.hbm [shape: f32[2,8,16], index: 0, kind: input, shape index: {}]
  %s1 = inlined_call_operand.hbm [shape: f32[2,16], index: 1, kind: input, shape index: {}]
  %s2 = inlined_call_operand.hbm [shape: f32[16,32], index: 2, kind: input, shape index: {}]
  %s3 = inlined_call_operand.hbm [shape: f32[16,32], index: 3, kind: input, shape index: {}]
  %s4 = inlined_call_operand.hbm [shape: f32[1,32], index: 4, kind: input, shape index: {}]
  %s5 = inlined_call_operand.hbm [shape: f32[2,16], index: 5, kind: output, shape index: {0}]
  %s6 = inlined_call_operand.hbm [shape: f32[2,8], index: 6, kind: output, shape index: {1}]
  %7 = xla_tuple %s5, %s6
  %s8 = sld [smem:[#allocation0]]
  $region58: #{tpu_custom_call.1} parent=0
    _
  %s10 = ssub.s32 1, %s8
  %s11 = scalar_select 0, %s10, %s8
  $region1: #{tpu_custom_call.1} parent=0
    #allocation2 [shape = 'u8[8192]{0}', space=vmem, size = 0x2000, scoped, tag = 'input window, operand 0, single buffered']
    #allocation3 [shape = 's32[1]{0}', space=sflag, size = 0x4, scoped, tag = 'scoped memory for tpu_custom_call.1']
    #allocation4 [shape = 's32[1]{0}', space=sflag, size = 0x4, scoped, tag = 'scoped memory for tpu_custom_call.1']
    #allocation5 [shape = 'u8[1024]{0}', space=vmem, size = 0x400, scoped, tag = 'input window, operand 1, single buffered']
    #allocation6 [shape = 's32[1]{0}', space=sflag, size = 0x4, scoped, tag = 'scoped memory for tpu_custom_call.1']
    #allocation7 [shape = 'u8[8192]{0}', space=vmem, size = 0x2000, scoped, tag = 'input window, operand 2, single buffered']
    #allocation8 [shape = 'u8[8192]{0}', space=vmem, size = 0x2000, scoped, tag = 'input window, operand 3, single buffered']
    #allocation9 [shape = 's32[1]{0}', space=sflag, size = 0x4, scoped, tag = 'scoped memory for tpu_custom_call.1']
    #allocation10 [shape = 'u8[512]{0}', space=vmem, size = 0x400, scoped, tag = 'input window, operand 4, single buffered']
    #allocation11 [shape = 'u8[1024]{0}', space=vmem, size = 0x400, scoped, tag = 'output window, operand 0, single buffered']
    #allocation12 [shape = 'u8[1024]{0}', space=vmem, size = 0x400, scoped, tag = 'output window, operand 1, single buffered']
    #allocation13 [shape = 's32[1]{0}', space=sflag, size = 0x4, scoped, tag = 'scoped memory for tpu_custom_call.1']
    %12 = vsyncpa [#allocation3], 0
    %13 = vsyncpa [#allocation6], 0
    %14 = vsyncpa [#allocation9], 0
    %15 = vsyncpa [#allocation4], 0
    %16 = vsyncpa [#allocation13], 0
    // Predicated region
    $region2: #{tpu_custom_call.1} parent=1 // pred_check
      _
    $region3: #{tpu_custom_call.1} parent=1 // pred_check_branch
      %18 = sbr.rel (0) target = $region5
    $region4: #{tpu_custom_call.1} parent=1 // pred_region
      %s20 = ssub.s32 256, 256
      %21 = vsyncadd [#allocation3], %s20
      %s22 = sshll.u32 [#allocation2], 4
      %s23 = int_to_ptr.vmem [resolvable:$true] %s22
      %28 = dma.hbm_to_vmem [thread:$0]  %s0, 256, %s23, [#allocation3], 128, 128, 8
    $region5: #{tpu_custom_call.1} parent=1 // pred_fallthru
      _
    // Predicated region
    $region6: #{tpu_custom_call.1} parent=1 // pred_check
      _
    $region7: #{tpu_custom_call.1} parent=1 // pred_check_branch
      %30 = sbr.rel (0) target = $region9
    $region8: #{tpu_custom_call.1} parent=1 // pred_region
      %s32 = ssub.s32 32, 32
      %33 = vsyncadd [#allocation6], %s32
      %s35 = sshll.u32 [#allocation5], 4
      %s36 = int_to_ptr.vmem [resolvable:$true] %s35
      %38 = dma.hbm_to_vmem [thread:$0]  %s1, 32, %s36, [#allocation6]
    $region9: #{tpu_custom_call.1} parent=1 // pred_fallthru
      _
    // Predicated region
    $region10: #{tpu_custom_call.1} parent=1 // pred_check
      _
    $region11: #{tpu_custom_call.1} parent=1 // pred_check_branch
      %40 = sbr.rel (0) target = $region13
    $region12: #{tpu_custom_call.1} parent=1 // pred_region
      %s42 = ssub.s32 256, 256
      %43 = vsyncadd [#allocation6], %s42
      %s44 = sshll.u32 [#allocation7], 4
      %s45 = int_to_ptr.vmem [resolvable:$true] %s44
      %50 = dma.hbm_to_vmem [thread:$0]  %s2, 256, %s45, [#allocation6], 128, 128, 8
    $region13: #{tpu_custom_call.1} parent=1 // pred_fallthru
      _
    // Predicated region
    $region14: #{tpu_custom_call.1} parent=1 // pred_check
      _
    $region15: #{tpu_custom_call.1} parent=1 // pred_check_branch
      %52 = sbr.rel (0) target = $region17
    $region16: #{tpu_custom_call.1} parent=1 // pred_region
      %s54 = ssub.s32 256, 256
      %55 = vsyncadd [#allocation9], %s54
      %s56 = sshll.u32 [#allocation8], 4
      %s57 = int_to_ptr.vmem [resolvable:$true] %s56
      %62 = dma.hbm_to_vmem [thread:$0]  %s3, 256, %s57, [#allocation9], 128, 128, 8
    $region17: #{tpu_custom_call.1} parent=1 // pred_fallthru
      _
    // Predicated region
    $region18: #{tpu_custom_call.1} parent=1 // pred_check
      _
    $region19: #{tpu_custom_call.1} parent=1 // pred_check_branch
      %64 = sbr.rel (0) target = $region21
    $region20: #{tpu_custom_call.1} parent=1 // pred_region
      %s66 = ssub.s32 16, 16
      %67 = vsyncadd [#allocation9], %s66
      %s69 = sshll.u32 [#allocation10], 4
      %s70 = int_to_ptr.vmem [resolvable:$true] %s69
      %72 = dma.hbm_to_vmem [thread:$0]  %s4, 16, %s70, [#allocation9]
    $region21: #{tpu_custom_call.1} parent=1 // pred_fallthru
      _
    // Predicated region
    $region22: #{tpu_custom_call.1} parent=1 // pred_check
      _
    $region23: #{tpu_custom_call.1} parent=1 // pred_check_branch
      %74 = sbr.rel (0) target = $region25
    $region24: #{tpu_custom_call.1} parent=1 // pred_region
      %75 = dma.done [#allocation3], 256
    $region25: #{tpu_custom_call.1} parent=1 // pred_fallthru
      _
    // Predicated region
    $region26: #{tpu_custom_call.1} parent=1 // pred_check
      _
    $region27: #{tpu_custom_call.1} parent=1 // pred_check_branch
      %77 = sbr.rel (0) target = $region29
    $region28: #{tpu_custom_call.1} parent=1 // pred_region
      %78 = dma.done [#allocation6], 32
    $region29: #{tpu_custom_call.1} parent=1 // pred_fallthru
      _
    // Predicated region
    $region30: #{tpu_custom_call.1} parent=1 // pred_check
      _
    $region31: #{tpu_custom_call.1} parent=1 // pred_check_branch
      %80 = sbr.rel (0) target = $region33
    $region32: #{tpu_custom_call.1} parent=1 // pred_region
      %81 = dma.done [#allocation6], 256
    $region33: #{tpu_custom_call.1} parent=1 // pred_fallthru
      _
    // Predicated region
    $region34: #{tpu_custom_call.1} parent=1 // pred_check
      _
    $region35: #{tpu_custom_call.1} parent=1 // pred_check_branch
      %83 = sbr.rel (0) target = $region37
    $region36: #{tpu_custom_call.1} parent=1 // pred_region
      %84 = dma.done [#allocation9], 256
    $region37: #{tpu_custom_call.1} parent=1 // pred_fallthru
      _
    // Predicated region
    $region38: #{tpu_custom_call.1} parent=1 // pred_check
      _
    $region39: #{tpu_custom_call.1} parent=1 // pred_check_branch
      %86 = sbr.rel (0) target = $region41
    $region40: #{tpu_custom_call.1} parent=1 // pred_region
      %87 = dma.done [#allocation9], 16
    $region41: #{tpu_custom_call.1} parent=1 // pred_fallthru
      _
    %v88 = vld [vmem:[#allocation2] sm:$0xff]
    %v89 = vld [vmem:[#allocation2 + $0x8] sm:$0xff]
    %v90 = vld [vmem:[#allocation7] sm:$0xff]
    %v91 = vld [vmem:[#allocation7 + $0x8] sm:$0xff]
    %vm92 = vcmask 130048
    %v94 = vsel %vm92, %v88, 0
    %v97 = vsel %vm92, %v89, 0
    %99 = vmatprep.subr.mxu0 0.0
    %100 = vmatpush1.msra.mxu0 %v90
    %101 = vmatprep.subr.mxu0 0.0
    %102 = vmatpush1.msra.mxu0 %v91
    %103 = vmatprep.subr.mxu0 0.0
    %104 = vmatpush1.msra.mxu0 0.0
    %105 = vmatprep.subr.mxu0 0.0
    %106 = vmatpush1.msra.mxu0 0.0
    %107 = vmatprep.subr.mxu0 0.0
    %108 = vmatpush1.msra.mxu0 0.0
    %109 = vmatprep.subr.mxu0 0.0
    %110 = vmatpush1.msra.mxu0 0.0
    %111 = vmatprep.subr.mxu0 0.0
    %112 = vmatpush1.msra.mxu0 0.0
    %113 = vmatprep.subr.mxu0 0.0
    %114 = vmatpush1.msra.mxu0 0.0
    %115 = vmatprep.subr.mxu0 0.0
    %116 = vmatpush1.msra.mxu0 0.0
    %117 = vmatprep.subr.mxu0 0.0
    %118 = vmatpush1.msra.mxu0 0.0
    %119 = vmatprep.subr.mxu0 0.0
    %120 = vmatpush1.msra.mxu0 0.0
    %121 = vmatprep.subr.mxu0 0.0
    %122 = vmatpush1.msra.mxu0 0.0
    %123 = vmatprep.subr.mxu0 0.0
    %124 = vmatpush1.msra.mxu0 0.0
    %125 = vmatprep.subr.mxu0 0.0
    %126 = vmatpush1.msra.mxu0 0.0
    %127 = vmatprep.subr.mxu0 0.0
    %128 = vmatpush1.msra.mxu0 0.0
    %129 = vmatprep.subr.mxu0 0.0
    %130 = vmatpush1.msra.mxu0 0.0
    %131 = vmatprep.subr.mxu0 0.0
    %132 = vmatpush1.msra.mxu0 0.0
    %133 = vmatprep.subr.mxu0 0.0
    %134 = vmatpush1.msra.mxu0 0.0
    %135 = vmatprep.subr.mxu0 0.0
    %136 = vmatpush1.msra.mxu0 0.0
    %137 = vmatprep.subr.mxu0 0.0
    %138 = vmatpush1.msra.mxu0 0.0
    %139 = vmatprep.subr.mxu0 0.0
    %140 = vmatpush1.msra.mxu0 0.0
    %141 = vmatprep.subr.mxu0 0.0
    %142 = vmatpush1.msra.mxu0 0.0
    %143 = vmatprep.subr.mxu0 0.0
    %144 = vmatpush1.msra.mxu0 0.0
    %145 = vmatprep.subr.mxu0 0.0
    %146 = vmatpush1.msra.mxu0 0.0
    %147 = vmatprep.subr.mxu0 0.0
    %148 = vmatpush1.msra.mxu0 0.0
    %149 = vmatprep.subr.mxu0 0.0
    %150 = vmatpush1.msra.mxu0 0.0
    %151 = vmatprep.subr.mxu0 0.0
    %152 = vmatpush1.msra.mxu0 0.0
    %153 = vmatprep.subr.mxu0 0.0
    %154 = vmatpush1.msra.mxu0 0.0
    %155 = vmatprep.subr.mxu0 0.0
    %156 = vmatpush1.msra.mxu0 0.0
    %157 = vmatprep.subr.mxu0 0.0
    %158 = vmatpush1.msra.mxu0 0.0
    %159 = vmatprep.subr.mxu0 0.0
    %160 = vmatpush1.msra.mxu0 0.0
    %161 = vmatprep.subr.mxu0 0.0
    %162 = vmatpush1.msra.mxu0 0.0
    %163 = vmatprep.mubr.f32.mxu0 0.0
    %164 = vmatmul.mubr.f32.gmra.mrb[0].mxu0 %v94
    %v165 = vpop.f32.mrb[0].mxu0
    %v166 = vadd.f32 0.0, %v165
    %v167 = vpop.f32.mrb[0].mxu0
    %168 = vmatprep.mubr.f32.mxu0 0.0
    %169 = vmatmul.mubr.f32.gmra.mrb[0].mxu0 %v97
    %v170 = vpop.f32.mrb[0].mxu0
    %v171 = vadd.f32 0.0, %v170
    %v172 = vpop.f32.mrb[0].mxu0
    %173 = vdwg.mxu0
    %v174 = vld [vmem:[#allocation5] sm:$0x3]
    %v175 = vld [vmem:[#allocation8] sm:$0xff]
    %v176 = vld [vmem:[#allocation8 + $0x8] sm:$0xff]
    %v178 = vsel %vm92, %v174, 0
    %180 = vmatprep.subr.mxu0 0.0
    %181 = vmatpush1.msra.mxu0 %v175
    %182 = vmatprep.subr.mxu0 0.0
    %183 = vmatpush1.msra.mxu0 %v176
    %184 = vmatprep.subr.mxu0 0.0
    %185 = vmatpush1.msra.mxu0 0.0
    %186 = vmatprep.subr.mxu0 0.0
    %187 = vmatpush1.msra.mxu0 0.0
    %188 = vmatprep.subr.mxu0 0.0
    %189 = vmatpush1.msra.mxu0 0.0
    %190 = vmatprep.subr.mxu0 0.0
    %191 = vmatpush1.msra.mxu0 0.0
    %192 = vmatprep.subr.mxu0 0.0
    %193 = vmatpush1.msra.mxu0 0.0
    %194 = vmatprep.subr.mxu0 0.0
    %195 = vmatpush1.msra.mxu0 0.0
    %196 = vmatprep.subr.mxu0 0.0
    %197 = vmatpush1.msra.mxu0 0.0
    %198 = vmatprep.subr.mxu0 0.0
    %199 = vmatpush1.msra.mxu0 0.0
    %200 = vmatprep.subr.mxu0 0.0
    %201 = vmatpush1.msra.mxu0 0.0
    %202 = vmatprep.subr.mxu0 0.0
    %203 = vmatpush1.msra.mxu0 0.0
    %204 = vmatprep.subr.mxu0 0.0
    %205 = vmatpush1.msra.mxu0 0.0
    %206 = vmatprep.subr.mxu0 0.0
    %207 = vmatpush1.msra.mxu0 0.0
    %208 = vmatprep.subr.mxu0 0.0
    %209 = vmatpush1.msra.mxu0 0.0
    %210 = vmatprep.subr.mxu0 0.0
    %211 = vmatpush1.msra.mxu0 0.0
    %212 = vmatprep.subr.mxu0 0.0
    %213 = vmatpush1.msra.mxu0 0.0
    %214 = vmatprep.subr.mxu0 0.0
    %215 = vmatpush1.msra.mxu0 0.0
    %216 = vmatprep.subr.mxu0 0.0
    %217 = vmatpush1.msra.mxu0 0.0
    %218 = vmatprep.subr.mxu0 0.0
    %219 = vmatpush1.msra.mxu0 0.0
    %220 = vmatprep.subr.mxu0 0.0
    %221 = vmatpush1.msra.mxu0 0.0
    %222 = vmatprep.subr.mxu0 0.0
    %223 = vmatpush1.msra.mxu0 0.0
    %224 = vmatprep.subr.mxu0 0.0
    %225 = vmatpush1.msra.mxu0 0.0
    %226 = vmatprep.subr.mxu0 0.0
    %227 = vmatpush1.msra.mxu0 0.0
    %228 = vmatprep.subr.mxu0 0.0
    %229 = vmatpush1.msra.mxu0 0.0
    %230 = vmatprep.subr.mxu0 0.0
    %231 = vmatpush1.msra.mxu0 0.0
    %232 = vmatprep.subr.mxu0 0.0
    %233 = vmatpush1.msra.mxu0 0.0
    %234 = vmatprep.subr.mxu0 0.0
    %235 = vmatpush1.msra.mxu0 0.0
    %236 = vmatprep.subr.mxu0 0.0
    %237 = vmatpush1.msra.mxu0 0.0
    %238 = vmatprep.subr.mxu0 0.0
    %239 = vmatpush1.msra.mxu0 0.0
    %240 = vmatprep.subr.mxu0 0.0
    %241 = vmatpush1.msra.mxu0 0.0
    %242 = vmatprep.subr.mxu0 0.0
    %243 = vmatpush1.msra.mxu0 0.0
    %244 = vmatprep.mubr.f32.mxu0 0.0
    %245 = vmatmul.mubr.f32.gmra.mrb[0].mxu0 %v178
    %v246 = vpop.f32.mrb[0].mxu0
    %v247 = vadd.f32 0.0, %v246
    %v248 = vpop.f32.mrb[0].mxu0
    %249 = vdwg.mxu0
    %v252 = vunpack.c.l.s4 1966171168
    %v253 = vunpack.c.0.s8 %v252
    %v254 = vlaneseq
    %v255 = vshrl.u32 %v254, 7
    %v256 = vsub.s32 %v253, %v255
    %v257 = vrot.slane %v247, %v256
    %v258 = vcombine.high %v257, %v257
    %v260 = vunpack.c.l.s4 1966171168
    %v261 = vunpack.c.0.s8 %v260
    %v262 = vlaneseq
    %v263 = vshrl.u32 %v262, 7
    %v264 = vsub.s32 %v261, %v263
    %v265 = vrot.slane %v257, %v264
    %v267 = vunpack.c.l.s4 1966171168
    %v268 = vunpack.c.0.s8 %v267
    %v269 = vlaneseq
    %v270 = vshrl.u32 %v269, 7
    %v271 = vsub.s32 %v268, %v270
    %v272 = vrot.slane %v258, %v271
    %v273 = vlaneseq
    %v274 = vshrl.u32 %v273, 7
    %v275 = vsub.s32 0, %v274
    %v276 = vrot.slane %v265, %v275
    %v277 = vlaneseq
    %v278 = vshrl.u32 %v277, 7
    %v279 = vsub.s32 0, %v278
    %v280 = vrot.slane %v272, %v279
    %v283 = vadd.f32 %v166, %v276
    %v284 = vadd.f32 %v171, %v280
    %v285 = vtanh.pop %v283
    %v286 = vtanh.pop %v284
    %v287 = vld [vmem:[#allocation10] sm:$0x1]
    %v289 = vlaneseq
    %v290 = vshrl.u32 %v289, 7
    %v291 = vsub.s32 0, %v290
    %v292 = vrot.slane %v287, %v291
    %v294 = vmul.f32 %v285, %v292
    %v295 = vmul.f32 %v286, %v292
    %vm296 = vcmask 261120
    %v297 = vsel %vm296, %v294, 0.0
    %298 = vadd.xlane.f32.xlu0 %v297
    %v299 = vpop.xlane.xlu0 %298
    %v300 = vsel %vm296, %v295, 0.0
    %301 = vadd.xlane.f32.xlu0 %v300
    %v302 = vpop.xlane.xlu0 %301
    %v305 = vlaneseq
    %v306 = vand.u32 %v305, 127
    %v307 = vlaneseq
    %v308 = vshrl.u32 %v307, 7
    %v309 = vsub.s32 %v306, %v308
    %v310 = vrot.slane %v299, %v309
    %v311 = vlaneseq
    %v312 = vshrl.u32 %v311, 7
    %v313 = vsub.s32 %v306, %v312
    %v314 = vrot.slane %v302, %v313
    %vm315 = vcmask 1041409
    %v316 = vsel %vm315, %v314, %v310
    %vm318 = vcmask 58368
    %v319 = vsel %vm318, %v316, -inf
    %320 = vmax.xlane.f32.xlu0 %v319
    %v321 = vpop.xlane.xlu0 %320
    %v323 = vlaneseq
    %v324 = vshrl.u32 %v323, 7
    %v325 = vsub.s32 0, %v324
    %v326 = vrot.slane %v321, %v325
    %v327 = vlaneseq
    %v328 = vshrl.u32 %v327, 7
    %v329 = vsub.s32 1, %v328
    %v330 = vrot.slane %v321, %v329
    %v333 = vsub.f32 %v299, %v326
    %v334 = vsub.f32 %v302, %v330
    %v335 = vmul.f32 %v333, 1.442695
    %v336 = vpow.pop %v335
    %v337 = vmul.f32 %v334, 1.442695
    %v338 = vpow.pop %v337
    %341 = vset.pattern.permute.xlu0 0
    %342 = vperm.xlu0 %341, %v336
    %v343 = vpop.permute.xlu0 %342
    %344 = vset.pattern.permute.xlu0 0
    %345 = vperm.xlu0 %344, %v338
    %v346 = vpop.permute.xlu0 %345
    %v347 = vlaneseq
    %v348 = vshrl.u32 %v347, 7
    %v349 = vsub.s32 %v306, %v348
    %v350 = vrot.slane %v343, %v349
    %v351 = vlaneseq
    %v352 = vshrl.u32 %v351, 7
    %v353 = vsub.s32 %v306, %v352
    %v354 = vrot.slane %v346, %v353
    %v355 = vsel %vm315, %v354, %v350
    %v357 = vsel %vm318, %v355, 0.0
    %358 = vadd.xlane.f32.xlu0 %v357
    %v359 = vpop.xlane.xlu0 %358
    %v360 = vrcp.pop %v359
    %v362 = vlaneseq
    %v363 = vshrl.u32 %v362, 7
    %v364 = vsub.s32 0, %v363
    %v365 = vrot.slane %v360, %v364
    %v366 = vlaneseq
    %v367 = vshrl.u32 %v366, 7
    %v368 = vsub.s32 1, %v367
    %v369 = vrot.slane %v360, %v368
    %v372 = vmul.f32 %v336, %v365
    %v373 = vmul.f32 %v338, %v369
    %376 = vset.pattern.permute.xlu0 0
    %377 = vperm.xlu0 %376, %v372
    %v378 = vpop.permute.xlu0 %377
    %379 = vset.pattern.permute.xlu0 0
    %380 = vperm.xlu0 %379, %v373
    %v381 = vpop.permute.xlu0 %380
    %v382 = vlaneseq
    %v383 = vshrl.u32 %v382, 7
    %v384 = vsub.s32 %v306, %v383
    %v385 = vrot.slane %v378, %v384
    %v386 = vlaneseq
    %v387 = vshrl.u32 %v386, 7
    %v388 = vsub.s32 %v306, %v387
    %v389 = vrot.slane %v381, %v388
    %v390 = vsel %vm315, %v389, %v385
    %392 = vst.msk [vmem:[#allocation12] sm:$0x3] %vm318, %v390
    %vm393 = vcmask 64512
    %v394 = vsel %vm393, %v385, 0
    %396 = vmatprep.subr.mxu0 0.0
    %397 = vmatpush1.msra.mxu0 %v88
    %398 = vmatprep.subr.mxu0 0.0
    %399 = vmatpush1.msra.mxu0 0.0
    %400 = vmatprep.subr.mxu0 0.0
    %401 = vmatpush1.msra.mxu0 0.0
    %402 = vmatprep.subr.mxu0 0.0
    %403 = vmatpush1.msra.mxu0 0.0
    %404 = vmatprep.subr.mxu0 0.0
    %405 = vmatpush1.msra.mxu0 0.0
    %406 = vmatprep.subr.mxu0 0.0
    %407 = vmatpush1.msra.mxu0 0.0
    %408 = vmatprep.subr.mxu0 0.0
    %409 = vmatpush1.msra.mxu0 0.0
    %410 = vmatprep.subr.mxu0 0.0
    %411 = vmatpush1.msra.mxu0 0.0
    %412 = vmatprep.subr.mxu0 0.0
    %413 = vmatpush1.msra.mxu0 0.0
    %414 = vmatprep.subr.mxu0 0.0
    %415 = vmatpush1.msra.mxu0 0.0
    %416 = vmatprep.subr.mxu0 0.0
    %417 = vmatpush1.msra.mxu0 0.0
    %418 = vmatprep.subr.mxu0 0.0
    %419 = vmatpush1.msra.mxu0 0.0
    %420 = vmatprep.subr.mxu0 0.0
    %421 = vmatpush1.msra.mxu0 0.0
    %422 = vmatprep.subr.mxu0 0.0
    %423 = vmatpush1.msra.mxu0 0.0
    %424 = vmatprep.subr.mxu0 0.0
    %425 = vmatpush1.msra.mxu0 0.0
    %426 = vmatprep.subr.mxu0 0.0
    %427 = vmatpush1.msra.mxu0 0.0
    %428 = vmatprep.subr.mxu0 0.0
    %429 = vmatpush1.msra.mxu0 0.0
    %430 = vmatprep.subr.mxu0 0.0
    %431 = vmatpush1.msra.mxu0 0.0
    %432 = vmatprep.subr.mxu0 0.0
    %433 = vmatpush1.msra.mxu0 0.0
    %434 = vmatprep.subr.mxu0 0.0
    %435 = vmatpush1.msra.mxu0 0.0
    %436 = vmatprep.subr.mxu0 0.0
    %437 = vmatpush1.msra.mxu0 0.0
    %438 = vmatprep.subr.mxu0 0.0
    %439 = vmatpush1.msra.mxu0 0.0
    %440 = vmatprep.subr.mxu0 0.0
    %441 = vmatpush1.msra.mxu0 0.0
    %442 = vmatprep.subr.mxu0 0.0
    %443 = vmatpush1.msra.mxu0 0.0
    %444 = vmatprep.subr.mxu0 0.0
    %445 = vmatpush1.msra.mxu0 0.0
    %446 = vmatprep.subr.mxu0 0.0
    %447 = vmatpush1.msra.mxu0 0.0
    %448 = vmatprep.subr.mxu0 0.0
    %449 = vmatpush1.msra.mxu0 0.0
    %450 = vmatprep.subr.mxu0 0.0
    %451 = vmatpush1.msra.mxu0 0.0
    %452 = vmatprep.subr.mxu0 0.0
    %453 = vmatpush1.msra.mxu0 0.0
    %454 = vmatprep.subr.mxu0 0.0
    %455 = vmatpush1.msra.mxu0 0.0
    %456 = vmatprep.subr.mxu0 0.0
    %457 = vmatpush1.msra.mxu0 0.0
    %458 = vmatprep.subr.mxu0 0.0
    %459 = vmatpush1.msra.mxu0 0.0
    %460 = vmatprep.mubr.f32.mxu0 0.0
    %461 = vmatmul.mubr.f32.gmra.mrb[0].mxu0 %v394
    %v462 = vpop.f32.mrb[0].mxu0
    %v463 = vadd.f32 0.0, %v462
    %v464 = vpop.f32.mrb[0].mxu0
    %465 = vdwg.mxu0
    %v466 = vsel %vm393, %v389, 0
    %468 = vmatprep.subr.mxu0 0.0
    %469 = vmatpush1.msra.mxu0 %v89
    %470 = vmatprep.subr.mxu0 0.0
    %471 = vmatpush1.msra.mxu0 0.0
    %472 = vmatprep.subr.mxu0 0.0
    %473 = vmatpush1.msra.mxu0 0.0
    %474 = vmatprep.subr.mxu0 0.0
    %475 = vmatpush1.msra.mxu0 0.0
    %476 = vmatprep.subr.mxu0 0.0
    %477 = vmatpush1.msra.mxu0 0.0
    %478 = vmatprep.subr.mxu0 0.0
    %479 = vmatpush1.msra.mxu0 0.0
    %480 = vmatprep.subr.mxu0 0.0
    %481 = vmatpush1.msra.mxu0 0.0
    %482 = vmatprep.subr.mxu0 0.0
    %483 = vmatpush1.msra.mxu0 0.0
    %484 = vmatprep.subr.mxu0 0.0
    %485 = vmatpush1.msra.mxu0 0.0
    %486 = vmatprep.subr.mxu0 0.0
    %487 = vmatpush1.msra.mxu0 0.0
    %488 = vmatprep.subr.mxu0 0.0
    %489 = vmatpush1.msra.mxu0 0.0
    %490 = vmatprep.subr.mxu0 0.0
    %491 = vmatpush1.msra.mxu0 0.0
    %492 = vmatprep.subr.mxu0 0.0
    %493 = vmatpush1.msra.mxu0 0.0
    %494 = vmatprep.subr.mxu0 0.0
    %495 = vmatpush1.msra.mxu0 0.0
    %496 = vmatprep.subr.mxu0 0.0
    %497 = vmatpush1.msra.mxu0 0.0
    %498 = vmatprep.subr.mxu0 0.0
    %499 = vmatpush1.msra.mxu0 0.0
    %500 = vmatprep.subr.mxu0 0.0
    %501 = vmatpush1.msra.mxu0 0.0
    %502 = vmatprep.subr.mxu0 0.0
    %503 = vmatpush1.msra.mxu0 0.0
    %504 = vmatprep.subr.mxu0 0.0
    %505 = vmatpush1.msra.mxu0 0.0
    %506 = vmatprep.subr.mxu0 0.0
    %507 = vmatpush1.msra.mxu0 0.0
    %508 = vmatprep.subr.mxu0 0.0
    %509 = vmatpush1.msra.mxu0 0.0
    %510 = vmatprep.subr.mxu0 0.0
    %511 = vmatpush1.msra.mxu0 0.0
    %512 = vmatprep.subr.mxu0 0.0
    %513 = vmatpush1.msra.mxu0 0.0
    %514 = vmatprep.subr.mxu0 0.0
    %515 = vmatpush1.msra.mxu0 0.0
    %516 = vmatprep.subr.mxu0 0.0
    %517 = vmatpush1.msra.mxu0 0.0
    %518 = vmatprep.subr.mxu0 0.0
    %519 = vmatpush1.msra.mxu0 0.0
    %520 = vmatprep.subr.mxu0 0.0
    %521 = vmatpush1.msra.mxu0 0.0
    %522 = vmatprep.subr.mxu0 0.0
    %523 = vmatpush1.msra.mxu0 0.0
    %524 = vmatprep.subr.mxu0 0.0
    %525 = vmatpush1.msra.mxu0 0.0
    %526 = vmatprep.subr.mxu0 0.0
    %527 = vmatpush1.msra.mxu0 0.0
    %528 = vmatprep.subr.mxu0 0.0
    %529 = vmatpush1.msra.mxu0 0.0
    %530 = vmatprep.subr.mxu0 0.0
    %531 = vmatpush1.msra.mxu0 0.0
    %532 = vmatprep.mubr.f32.mxu0 0.0
    %533 = vmatmul.mubr.f32.gmra.mrb[0].mxu0 %v466
    %v534 = vpop.f32.mrb[0].mxu0
    %v535 = vadd.f32 0.0, %v534
    %v536 = vpop.f32.mrb[0].mxu0
    %537 = vdwg.mxu0
    %v540 = vrot.slane %v535, 7
    %v541 = vsel %vm315, %v540, %v463
    %vm543 = vcmask 123904
    %544 = vst.msk [vmem:[#allocation11] sm:$0x3] %vm543, %v541
    // Predicated region
    $region42: #{tpu_custom_call.1} parent=1 // pred_check
      _
    $region43: #{tpu_custom_call.1} parent=1 // pred_check_branch
      %546 = sbr.rel (0) target = $region45
    $region44: #{tpu_custom_call.1} parent=1 // pred_region
      %s548 = ssub.s32 32, 32
      %549 = vsyncadd [#allocation4], %s548
      %s551 = sshll.u32 [#allocation11], 4
      %s552 = int_to_ptr.vmem [resolvable:$true] %s551
      %554 = dma.vmem_to_hbm [thread:$0]  %s552, 32, %s5, [#allocation4]
    $region45: #{tpu_custom_call.1} parent=1 // pred_fallthru
      _
    // Predicated region
    $region46: #{tpu_custom_call.1} parent=1 // pred_check
      _
    $region47: #{tpu_custom_call.1} parent=1 // pred_check_branch
      %556 = sbr.rel (0) target = $region49
    $region48: #{tpu_custom_call.1} parent=1 // pred_region
      %s558 = ssub.s32 32, 32
      %559 = vsyncadd [#allocation13], %s558
      %s561 = sshll.u32 [#allocation12], 4
      %s562 = int_to_ptr.vmem [resolvable:$true] %s561
      %564 = dma.vmem_to_hbm [thread:$0]  %s562, 32, %s6, [#allocation13]
    $region49: #{tpu_custom_call.1} parent=1 // pred_fallthru
      _
    // Predicated region
    $region50: #{tpu_custom_call.1} parent=1 // pred_check
      _
    $region51: #{tpu_custom_call.1} parent=1 // pred_check_branch
      %566 = sbr.rel (0) target = $region53
    $region52: #{tpu_custom_call.1} parent=1 // pred_region
      %567 = dma.done [#allocation4], 32
    $region53: #{tpu_custom_call.1} parent=1 // pred_fallthru
      _
    // Predicated region
    $region54: #{tpu_custom_call.1} parent=1 // pred_check
      _
    $region55: #{tpu_custom_call.1} parent=1 // pred_check_branch
      %569 = sbr.rel (0) target = $region57
    $region56: #{tpu_custom_call.1} parent=1 // pred_region
      %570 = dma.done [#allocation13], 32
    $region57: #{tpu_custom_call.1} parent=1 // pred_fallthru
      _
    %571 = vsyncpa [#allocation3], 1
    %572 = vsyncpa [#allocation6], 1
    %573 = vsyncpa [#allocation9], 1
    %574 = vsyncpa [#allocation4], 1
    %575 = vsyncpa [#allocation13], 1

</llo_original>
